<compile_context>
chip_gen: v6e
topology: v6e:2x2x1
jax: 0.10.0
libtpu: 0.0.40
codegen_flags: <defaults>
</compile_context>

<pallas_src>
import functools

import jax
import jax.numpy as jnp
from jax.experimental import pallas as pl
from jax.experimental.pallas import tpu as pltpu


def _gem_kernel(x_ref, p_ref, o_ref, *, inv_s, eps):
    # x_ref: (TR, S) rows = (n, c) pairs, S = H*W on lanes.
    # p_ref: (1, 1) GeM exponent.  o_ref: (TR, 1).
    x = x_ref[...].astype(jnp.float32)
    p = p_ref[...].astype(jnp.float32)                 # (1, 1), broadcasts
    xc = jnp.maximum(x, eps)                           # clamp(min=eps) -> strictly positive
    y = jnp.exp(p * jnp.log(xc))                       # x^p with runtime exponent (EUP)
    mean = jnp.sum(y, axis=-1, keepdims=True) * inv_s  # avg_pool2d over full (H, W)
    out = jnp.exp(jnp.log(mean) / p)                   # mean^(1/p)
    o_ref[...] = out.astype(o_ref.dtype)


def gem_forward(x, p, eps=1e-6):
    """GeM pooling. x: (N, C, H, W), p: scalar or (1,) array. Returns (N, C, 1, 1)."""
    N, C, H, W = x.shape
    R, S = N * C, H * W
    x2 = x.reshape(R, S)                               # free reshape of contiguous NCHW
    p2 = jnp.asarray(p, jnp.float32).reshape(1, 1)

    # Row tile: as many rows as fit ~4 MiB per (double-buffered) input block,
    # capped at 2048, multiple of 8.  A single full-extent block needs no padding.
    row_bytes = S * jnp.dtype(x2.dtype).itemsize
    tr_cap = max(8, min(2048, int((4 * 1024 * 1024) // max(1, row_bytes))))
    tr_cap = max(8, (tr_cap // 8) * 8)
    if R <= tr_cap:
        TR, Rp = R, R                                  # full-dim block: always layout-legal
    else:
        TR = tr_cap
        Rp = ((R + TR - 1) // TR) * TR
        if Rp != R:
            x2 = jnp.pad(x2, ((0, Rp - R), (0, 0)))
    # TODO(synk): for extremely large H*W (block > VMEM) a second column grid axis with a
    # VMEM accumulator would be needed; typical GeM feature maps fit one column block.

    kern = functools.partial(_gem_kernel, inv_s=1.0 / float(S), eps=float(eps))
    out = pl.pallas_call(
        kern,
        out_shape=jax.ShapeDtypeStruct((Rp, 1), x.dtype),
        grid=(Rp // TR,),
        in_specs=[
            pl.BlockSpec((TR, S), lambda i: (i, 0)),
            pl.BlockSpec((1, 1), lambda i: (0, 0)),
        ],
        out_specs=pl.BlockSpec((TR, 1), lambda i: (i, 0)),
        compiler_params=pltpu.CompilerParams(
            dimension_semantics=("parallel",),
            vmem_limit_bytes=32 * 1024 * 1024,
        ),
    )(x2, p2)
    return out[:R].reshape(N, C, 1, 1)


def _gem_reference(x, p, eps=1e-6):
    pv = jnp.asarray(p, jnp.float32).reshape(())
    xc = jnp.maximum(x, eps)
    mean = jnp.mean(xc ** pv, axis=(-2, -1), keepdims=True)
    return mean ** (1.0 / pv)


if __name__ == "__main__":
    key = jax.random.PRNGKey(0)
    kx, _ = jax.random.split(key)

    N, C, H, W = 2, 4, 16, 16
    x = jax.random.normal(kx, (N, C, H, W), jnp.float32)
    p = jnp.ones((1,), jnp.float32) * 3.0              # nn.Parameter(torch.ones(1) * 3)

    out = jax.jit(gem_forward)(x, p)
    out = jax.block_until_ready(out)

    assert out.shape == (N, C, 1, 1), out.shape
    assert bool(jnp.all(jnp.isfinite(out)))
    ref = _gem_reference(x, p)
    assert bool(jnp.allclose(out, ref, rtol=1e-4, atol=1e-6)), (
        float(jnp.max(jnp.abs(out - ref))))
    print("KERNEL_OK")
</pallas_src>

<mosaic_0001>
module attributes {stable_mosaic.version = 11 : i64} {
  func.func @_gem_kernel(%arg0: i32, %arg1: memref<8x256xf32, #tpu.memory_space<vmem>>, %arg2: memref<1x1xf32, #tpu.memory_space<vmem>>, %arg3: memref<8x1xf32, #tpu.memory_space<vmem>>) attributes {dimension_semantics = [#tpu.dimension_semantics<parallel>], iteration_bounds = array<i64: 1>, scalar_prefetch = 0 : i64, scratch_operands = 0 : i64, tpu.core_type = #tpu.core_type<tc>, window_params = [{transform_indices = @transform_0, window_bounds = array<i64: 8, 256>}, {pipeline_mode = #tpu.pipeline_mode<synchronous>, transform_indices = @transform_1, window_bounds = array<i64: 1, 1>}, {transform_indices = @transform_2, window_bounds = array<i64: 8, 1>}]} {
    %c0 = arith.constant 0 : index
    %c0_0 = arith.constant 0 : index
    %0 = vector.load %arg1[%c0, %c0_0] : memref<8x256xf32, #tpu.memory_space<vmem>>, vector<8x256xf32>
    %c0_1 = arith.constant 0 : index
    %c0_2 = arith.constant 0 : index
    %1 = vector.load %arg2[%c0_1, %c0_2] : memref<1x1xf32, #tpu.memory_space<vmem>>, vector<1x1xf32>
    %cst = arith.constant 9.99999997E-7 : f32
    %2 = vector.broadcast %cst : f32 to vector<8x256xf32>
    %3 = arith.maximumf %0, %2 : vector<8x256xf32>
    %4 = math.log %3 : vector<8x256xf32>
    %5 = vector.broadcast %1 : vector<1x1xf32> to vector<8x256xf32>
    %6 = arith.mulf %5, %4 : vector<8x256xf32>
    %7 = math.exp %6 : vector<8x256xf32>
    %cst_3 = arith.constant dense<0.000000e+00> : vector<8xf32>
    %8 = vector.multi_reduction <add>, %7, %cst_3 [1] : vector<8x256xf32> to vector<8xf32>
    %9 = vector.shape_cast %8 : vector<8xf32> to vector<8x1xf32>
    %cst_4 = arith.constant 3.906250e-03 : f32
    %10 = vector.broadcast %cst_4 : f32 to vector<8x1xf32>
    %11 = arith.mulf %9, %10 : vector<8x1xf32>
    %12 = math.log %11 : vector<8x1xf32>
    %13 = vector.broadcast %1 : vector<1x1xf32> to vector<8x1xf32>
    %14 = arith.divf %12, %13 : vector<8x1xf32>
    %15 = math.exp %14 : vector<8x1xf32>
    %c0_5 = arith.constant 0 : index
    %c0_6 = arith.constant 0 : index
    %16 = vector.load %arg3[%c0_5, %c0_6] : memref<8x1xf32, #tpu.memory_space<vmem>>, vector<8x1xf32>
    tpu.vector_store %arg3[%c0_5, %c0_6], %15 {strides = array<i32>} : memref<8x1xf32, #tpu.memory_space<vmem>>, vector<8x1xf32>,
    return
  }
  func.func @transform_0(%arg0: i32) -> (i32, i32) {
    %c0_i32 = arith.constant 0 : i32
    %c0_i32_0 = arith.constant 0 : i32
    return %arg0, %c0_i32 : i32, i32
  }
  func.func @transform_1(%arg0: i32) -> (i32, i32) {
    %c0_i32 = arith.constant 0 : i32
    %c0_i32_0 = arith.constant 0 : i32
    %c0_i32_1 = arith.constant 0 : i32
    return %c0_i32, %c0_i32_0 : i32, i32
  }
  func.func @transform_2(%arg0: i32) -> (i32, i32) {
    %c0_i32 = arith.constant 0 : i32
    %c0_i32_0 = arith.constant 0 : i32
    return %arg0, %c0_i32 : i32, i32
  }
}

</mosaic_0001>

<llo_original>
// kernel: gem_forward.1
$region0: #{gem_forward.1}
  #allocation0 [shape = 'u32[]', space=smem, size = 0x4, offset = 0x4, fixed_abs, tag = 'smem constant byte address 0x4 - core index']
  #allocation1 [shape = 'u32[144,128]{1,0:T(1,128)}', space=vmem, size = 0x12000, scoped, tag = 'internal scratch']
  #allocation2 [shape = 'f32[1,1]{1,0:T(1,128)S(1)}', space=vmem, size = 0x200, scoped, tag = 'scoped memory for gem_forward.1']
  %s0 = inlined_call_operand.vmem [shape: f32[8,256], index: 0, kind: input, shape index: {}]
  %s1 = inlined_call_operand.<no memory space> [shape: f32[1,1], index: 1, kind: input, shape index: {}]
  %s2 = inlined_call_operand.vmem [shape: f32[8,1], index: 2, kind: output, shape index: {}]
  %s3 = sld [smem:[#allocation0]]
  $region18: #{gem_forward.1} parent=0
    _
  %s5 = ssub.s32 1, %s3
  %s6 = scalar_select 0, %s5, %s3
  %v7 = vstv %s1
  %8 = vst [vmem:[#allocation2] sm:$0x1] %v7
  // Predicated region
  $region2: #{gem_forward.1} parent=0 // pred_check
    _
  $region3: #{gem_forward.1} parent=0 // pred_check_branch
    %10 = sbr.rel (0) target = $region5
  $region4: #{gem_forward.1} parent=0 // pred_region
    _
  $region5: #{gem_forward.1} parent=0 // pred_fallthru
    _
  // Predicated region
  $region6: #{gem_forward.1} parent=0 // pred_check
    _
  $region7: #{gem_forward.1} parent=0 // pred_check_branch
    %12 = sbr.rel (0) target = $region9
  $region8: #{gem_forward.1} parent=0 // pred_region
    _
  $region9: #{gem_forward.1} parent=0 // pred_fallthru
    _
  %v13 = vld [vmem:[%s0] sm:$0xff]
  %v14 = vld [vmem:[%s0 + $0x8] sm:$0xff]
  %v15 = vld [vmem:[#allocation2] sm:$0x1]
  %v16 = vmax.f32 %v13, 1e-06
  %v17 = vmax.f32 %v14, 1e-06
  %v18 = vlog2.pop %v16
  %v19 = vmul.f32 %v18, 0.6931472
  %v20 = vlog2.pop %v17
  %v21 = vmul.f32 %v20, 0.6931472
  %v23 = vlaneseq
  %v24 = vshrl.u32 %v23, 7
  %v25 = vsub.s32 0, %v24
  %v26 = vrot.slane %v15, %v25
  %27 = vset.pattern.permute.xlu0 0
  %28 = vperm.xlu0 %27, %v26
  %v29 = vpop.permute.xlu0 %28
  %v31 = vmul.f32 %v29, %v19
  %v32 = vmul.f32 %v29, %v21
  %v33 = vmul.f32 %v31, 1.442695
  %v34 = vpow.pop %v33
  %v35 = vmul.f32 %v32, 1.442695
  %v36 = vpow.pop %v35
  %v37 = vadd.f32 %v34, %v36
  %38 = vadd.xlane.f32.xlu0 %v37
  %v39 = vpop.xlane.xlu0 %38
  %v40 = vmul.f32 %v39, 0.00390625
  %v41 = vlog2.pop %v40
  %v42 = vmul.f32 %v41, 0.6931472
  %v44 = vrcp.pop %v26
  %v45 = vmul.f32 %v42, %v44
  %v46 = vmul.f32 %v45, 1.442695
  %v47 = vpow.pop %v46
  %vm48 = vcmask 7168
  %49 = vst.msk [vmem:[%s2] sm:$0xff] %vm48, %v47
  // Predicated region
  $region10: #{gem_forward.1} parent=0 // pred_check
    _
  $region11: #{gem_forward.1} parent=0 // pred_check_branch
    %51 = sbr.rel (0) target = $region13
  $region12: #{gem_forward.1} parent=0 // pred_region
    _
  $region13: #{gem_forward.1} parent=0 // pred_fallthru
    _
  // Predicated region
  $region14: #{gem_forward.1} parent=0 // pred_check
    _
  $region15: #{gem_forward.1} parent=0 // pred_check_branch
    %53 = sbr.rel (0) target = $region17
  $region16: #{gem_forward.1} parent=0 // pred_region
    _
  $region17: #{gem_forward.1} parent=0 // pred_fallthru
    _

</llo_original>
